<compile_context>
chip_gen: v5e
topology: v5e:2x2
jax: 0.10.0
libtpu: 0.0.40
codegen_flags: <defaults>
</compile_context>

<pallas_src>
from functools import partial

import jax
import jax.numpy as jnp
from jax.experimental import pallas as pl
from jax.experimental.pallas import tpu as pltpu

_LANE = 128
_NEG_BIG = jnp.float32(-1e30)  # "-inf" for padded logit columns (finite -> no NaN risk)


def _round_up(x, m):
    return (x + m - 1) // m * m


def _cdiv(a, b):
    return -(-a // b)


# ---------------------------------------------------------------------------
# Kernel
# ---------------------------------------------------------------------------
def _actor_kernel(x_ref, w_ref, b_ref, out_ref, xpad_ref):
    # x_ref:   (TB, S)     f32   un-padded state tile (S = real state_size)
    # w_ref:   (3, D, D)   bf16  packed, pre-transposed, 128-padded weights (resident)
    # b_ref:   (3, D)      f32   packed biases (padded logit cols carry -1e30)
    # out_ref: (TB, A_out) f32   narrow (lane-padded action) output tile
    # xpad_ref:(TB, D)     f32   VMEM staging buffer for the lane-padded state
    S = x_ref.shape[-1]
    cdt = w_ref.dtype  # matmul operand dtype (bf16 by default)

    # Lane-pad the state inside VMEM (zeros in padded lanes -> no effect on matmul).
    xpad_ref[...] = jnp.zeros_like(xpad_ref)
    xpad_ref[:, 0:S] = x_ref[...]
    x = xpad_ref[...].astype(cdt)

    w1 = w_ref[0]
    w2 = w_ref[1]
    w3 = w_ref[2]
    b1 = b_ref[0:1, :]  # (1, D) f32 — bias / ReLU / softmax stay f32
    b2 = b_ref[1:2, :]
    b3 = b_ref[2:3, :]

    h1 = jnp.dot(x, w1, preferred_element_type=jnp.float32) + b1
    h1 = jnp.maximum(h1, 0.0)

    h2 = jnp.dot(h1.astype(cdt), w2, preferred_element_type=jnp.float32) + b2
    h2 = jnp.maximum(h2, 0.0)

    # Padded logit columns get +(-1e30) from b3 -> exp() == 0 -> exact softmax over real cols.
    logits = jnp.dot(h2.astype(cdt), w3, preferred_element_type=jnp.float32) + b3

    m = jnp.max(logits, axis=-1, keepdims=True)
    e = jnp.exp(logits - m)
    s = jnp.sum(e, axis=-1, keepdims=True)
    probs = e / s  # exact divide: rows sum to 1 (safe for log-prob / PG losses)

    out_ref[...] = probs[:, 0:out_ref.shape[-1]]


# ---------------------------------------------------------------------------
# One-time parameter packing (hoists transposes / padding / casts out of the hot path)
# ---------------------------------------------------------------------------
def pack_actor_params(params, state_size, action_size, hidden_size=128,
                      weight_dtype=jnp.bfloat16):
    """PyTorch-convention params -> (w_slab [3,D,D] weight_dtype, b_slab [3,D] f32), D=128-padded."""
    D = _round_up(max(state_size, hidden_size, action_size), _LANE)

    w1 = jnp.zeros((D, D), jnp.float32).at[:state_size, :hidden_size].set(params["w1"].T)
    w2 = jnp.zeros((D, D), jnp.float32).at[:hidden_size, :hidden_size].set(params["w2"].T)
    w3 = jnp.zeros((D, D), jnp.float32).at[:hidden_size, :action_size].set(params["w3"].T)
    w_slab = jnp.stack([w1, w2, w3], axis=0).astype(weight_dtype)   # (3, D, D)

    b1 = jnp.zeros((D,), jnp.float32).at[:hidden_size].set(params["b1"])
    b2 = jnp.zeros((D,), jnp.float32).at[:hidden_size].set(params["b2"])
    b3 = jnp.full((D,), _NEG_BIG, jnp.float32).at[:action_size].set(params["b3"])
    b_slab = jnp.stack([b1, b2, b3], axis=0)                        # (3, D) f32

    return w_slab, b_slab


# ---------------------------------------------------------------------------
# Forward wrapper
# ---------------------------------------------------------------------------
@partial(jax.jit, static_argnames=("action_size", "block_batch"))
def actor_forward(state, w_slab, b_slab, *, action_size, block_batch=1024):
    """state: (B, state_size) f32. Returns (B, action_size) action probabilities."""
    B, S = state.shape
    D = w_slab.shape[-1]
    A_out = max(8, _round_up(action_size, 8))   # narrow, lane-padded output width

    # Balanced batch tiles; >=2 tiles once B>=16 so v7x's 2 TCs both get work.
    n_tiles = max(_cdiv(B, block_batch), 2 if B >= 16 else 1)
    TB = _round_up(_cdiv(B, n_tiles), 8)
    B_pad = _round_up(B, TB)

    x = state.astype(jnp.float32)
    if B_pad != B:
        x = jnp.pad(x, ((0, B_pad - B), (0, 0)))   # pad rows only; lanes stay at S

    out = pl.pallas_call(
        _actor_kernel,
        out_shape=jax.ShapeDtypeStruct((B_pad, A_out), jnp.float32),
        grid=(B_pad // TB,),
        in_specs=[
            pl.BlockSpec((TB, S), lambda i: (i, 0)),       # un-padded state tile
            pl.BlockSpec((3, D, D), lambda i: (0, 0, 0)),  # packed bf16 weights, resident
            pl.BlockSpec((3, D), lambda i: (0, 0)),        # packed f32 biases, resident
        ],
        out_specs=pl.BlockSpec((TB, A_out), lambda i: (i, 0)),
        scratch_shapes=[pltpu.VMEM((TB, D), jnp.float32)],  # lane-padded state staging
        compiler_params=pltpu.CompilerParams(
            dimension_semantics=("parallel",),              # shards batch tiles across TCs
        ),
    )(x, w_slab, b_slab)

    return out[:B, :action_size]


# ---------------------------------------------------------------------------
# Reference / init (PyTorch conventions)
# ---------------------------------------------------------------------------
def init_actor_params(key, state_size, action_size, hidden_size=128):
    """Deterministic synthetic init (PyTorch Linear weight shapes: (out, in))."""
    k1, k2, k3, k4, k5, k6 = jax.random.split(key, 6)

    def lin(kw, kb, fan_in, fan_out):
        bound = 1.0 / jnp.sqrt(fan_in)
        w = jax.random.uniform(kw, (fan_out, fan_in), jnp.float32, -bound, bound)
        b = jax.random.uniform(kb, (fan_out,), jnp.float32, -bound, bound)
        return w, b

    w1, b1 = lin(k1, k2, state_size, hidden_size)
    w2, b2 = lin(k3, k4, hidden_size, hidden_size)
    w3, b3 = lin(k5, k6, hidden_size, action_size)
    return {"w1": w1, "b1": b1, "w2": w2, "b2": b2, "w3": w3, "b3": b3}


def actor_ref(state, params):
    """Pure-JAX reference matching the PyTorch forward exactly (f32)."""
    x = jnp.maximum(state @ params["w1"].T + params["b1"], 0.0)
    x = jnp.maximum(x @ params["w2"].T + params["b2"], 0.0)
    logits = x @ params["w3"].T + params["b3"]
    return jax.nn.softmax(logits, axis=-1)


if __name__ == "__main__":
    # CartPole-v1: state_size=4, action_size=2; hidden=128 as in the module default.
    state_size, action_size, hidden_size = 4, 2, 128

    key = jax.random.PRNGKey(0)
    kp, kx1, kx2 = jax.random.split(key, 3)
    params = init_actor_params(kp, state_size, action_size, hidden_size)

    # One-time packing (transposes / padding / bf16 cast hoisted out of the per-call path).
    w_slab, b_slab = pack_actor_params(params, state_size, action_size, hidden_size)
    # TODO(synk): for bit-exact training-path math, pack with weight_dtype=jnp.float32.

    # --- small batch (single grid step) ---
    batch = 8
    state = jax.random.normal(kx1, (batch, state_size), dtype=jnp.float32)
    probs = jax.block_until_ready(actor_forward(state, w_slab, b_slab, action_size=action_size))
    ref = actor_ref(state, params)
    assert probs.shape == (batch, action_size)
    # Tolerance covers the bf16 matmul operands (accumulation is f32).
    assert jnp.allclose(probs, ref, atol=3e-2, rtol=3e-2), "mismatch vs reference (B=8)"
    assert jnp.allclose(jnp.sum(probs, axis=-1), 1.0, atol=1e-3), "rows must sum to 1 (B=8)"

    # --- odd batch (multi-step grid, padded batch rows, both-TC path on v7x) ---
    batch2 = 37
    state2 = jax.random.normal(kx2, (batch2, state_size), dtype=jnp.float32)
    probs2 = jax.block_until_ready(actor_forward(state2, w_slab, b_slab, action_size=action_size))
    ref2 = actor_ref(state2, params)
    assert probs2.shape == (batch2, action_size)
    assert jnp.allclose(probs2, ref2, atol=3e-2, rtol=3e-2), "mismatch vs reference (B=37)"
    assert jnp.allclose(jnp.sum(probs2, axis=-1), 1.0, atol=1e-3), "rows must sum to 1 (B=37)"

    print("KERNEL_OK")
</pallas_src>

<mosaic_0001>
module attributes {stable_mosaic.version = 11 : i64} {
  func.func @_actor_kernel(%arg0: i32, %arg1: memref<8x4xf32, #tpu.memory_space<vmem>>, %arg2: memref<3x128x128xbf16, #tpu.memory_space<vmem>>, %arg3: memref<3x128xf32, #tpu.memory_space<vmem>>, %arg4: memref<8x8xf32, #tpu.memory_space<vmem>>, %arg5: memref<8x128xf32, #tpu.memory_space<vmem>>) attributes {dimension_semantics = [#tpu.dimension_semantics<parallel>], iteration_bounds = array<i64: 1>, scalar_prefetch = 0 : i64, scratch_operands = 1 : i64, tpu.core_type = #tpu.core_type<tc>, window_params = [{transform_indices = @transform_0, window_bounds = array<i64: 8, 4>}, {pipeline_mode = #tpu.pipeline_mode<synchronous>, transform_indices = @transform_1, window_bounds = array<i64: 3, 128, 128>}, {pipeline_mode = #tpu.pipeline_mode<synchronous>, transform_indices = @transform_2, window_bounds = array<i64: 3, 128>}, {transform_indices = @transform_3, window_bounds = array<i64: 8, 8>}]} {
    %cst = arith.constant 0.000000e+00 : f32
    %0 = vector.broadcast %cst : f32 to vector<8x128xf32>
    %c0 = arith.constant 0 : index
    %c0_0 = arith.constant 0 : index
    %1 = vector.load %arg5[%c0, %c0_0] : memref<8x128xf32, #tpu.memory_space<vmem>>, vector<8x128xf32>
    tpu.vector_store %arg5[%c0, %c0_0], %0 {strides = array<i32>} : memref<8x128xf32, #tpu.memory_space<vmem>>, vector<8x128xf32>,
    %c0_1 = arith.constant 0 : index
    %c0_2 = arith.constant 0 : index
    %2 = vector.load %arg1[%c0_1, %c0_2] : memref<8x4xf32, #tpu.memory_space<vmem>>, vector<8x4xf32>
    %c0_3 = arith.constant 0 : index
    %c0_4 = arith.constant 0 : index
    %3 = vector.load %arg5[%c0_3, %c0_4] : memref<8x128xf32, #tpu.memory_space<vmem>>, vector<8x4xf32>
    tpu.vector_store %arg5[%c0_3, %c0_4], %2 {strides = array<i32>} : memref<8x128xf32, #tpu.memory_space<vmem>>, vector<8x4xf32>,
    %c0_5 = arith.constant 0 : index
    %c0_6 = arith.constant 0 : index
    %4 = vector.load %arg5[%c0_5, %c0_6] : memref<8x128xf32, #tpu.memory_space<vmem>>, vector<8x128xf32>
    %5 = arith.truncf %4 : vector<8x128xf32> to vector<8x128xbf16>
    %c0_7 = arith.constant 0 : index
    %c0_8 = arith.constant 0 : index
    %c0_9 = arith.constant 0 : index
    %6 = vector.load %arg2[%c0_7, %c0_8, %c0_9] : memref<3x128x128xbf16, #tpu.memory_space<vmem>>, vector<1x128x128xbf16>
    %7 = vector.shape_cast %6 : vector<1x128x128xbf16> to vector<128x128xbf16>
    %c1 = arith.constant 1 : index
    %c0_10 = arith.constant 0 : index
    %c0_11 = arith.constant 0 : index
    %8 = vector.load %arg2[%c1, %c0_10, %c0_11] : memref<3x128x128xbf16, #tpu.memory_space<vmem>>, vector<1x128x128xbf16>
    %9 = vector.shape_cast %8 : vector<1x128x128xbf16> to vector<128x128xbf16>
    %c2 = arith.constant 2 : index
    %c0_12 = arith.constant 0 : index
    %c0_13 = arith.constant 0 : index
    %10 = vector.load %arg2[%c2, %c0_12, %c0_13] : memref<3x128x128xbf16, #tpu.memory_space<vmem>>, vector<1x128x128xbf16>
    %11 = vector.shape_cast %10 : vector<1x128x128xbf16> to vector<128x128xbf16>
    %c0_14 = arith.constant 0 : index
    %c0_15 = arith.constant 0 : index
    %12 = vector.load %arg3[%c0_14, %c0_15] : memref<3x128xf32, #tpu.memory_space<vmem>>, vector<1x128xf32>
    %c1_16 = arith.constant 1 : index
    %c0_17 = arith.constant 0 : index
    %13 = vector.load %arg3[%c1_16, %c0_17] : memref<3x128xf32, #tpu.memory_space<vmem>>, vector<1x128xf32>
    %c2_18 = arith.constant 2 : index
    %c0_19 = arith.constant 0 : index
    %14 = vector.load %arg3[%c2_18, %c0_19] : memref<3x128xf32, #tpu.memory_space<vmem>>, vector<1x128xf32>
    %cst_20 = arith.constant dense<0.000000e+00> : vector<8x128xf32>
    %15 = tpu.matmul %5, %7, %cst_20 {dimension_numbers = #tpu.dot_dimension_numbers<[1], [0], [0], [1], [0, 0, 1, 1], [], []>} : vector<8x128xbf16>, vector<128x128xbf16>, vector<8x128xf32> -> vector<8x128xf32>
    %16 = vector.broadcast %12 : vector<1x128xf32> to vector<8x128xf32>
    %17 = arith.addf %15, %16 : vector<8x128xf32>
    %cst_21 = arith.constant 0.000000e+00 : f32
    %18 = vector.broadcast %cst_21 : f32 to vector<8x128xf32>
    %19 = arith.maximumf %17, %18 : vector<8x128xf32>
    %20 = arith.truncf %19 : vector<8x128xf32> to vector<8x128xbf16>
    %cst_22 = arith.constant dense<0.000000e+00> : vector<8x128xf32>
    %21 = tpu.matmul %20, %9, %cst_22 {dimension_numbers = #tpu.dot_dimension_numbers<[1], [0], [0], [1], [0, 0, 1, 1], [], []>} : vector<8x128xbf16>, vector<128x128xbf16>, vector<8x128xf32> -> vector<8x128xf32>
    %22 = vector.broadcast %13 : vector<1x128xf32> to vector<8x128xf32>
    %23 = arith.addf %21, %22 : vector<8x128xf32>
    %cst_23 = arith.constant 0.000000e+00 : f32
    %24 = vector.broadcast %cst_23 : f32 to vector<8x128xf32>
    %25 = arith.maximumf %23, %24 : vector<8x128xf32>
    %26 = arith.truncf %25 : vector<8x128xf32> to vector<8x128xbf16>
    %cst_24 = arith.constant dense<0.000000e+00> : vector<8x128xf32>
    %27 = tpu.matmul %26, %11, %cst_24 {dimension_numbers = #tpu.dot_dimension_numbers<[1], [0], [0], [1], [0, 0, 1, 1], [], []>} : vector<8x128xbf16>, vector<128x128xbf16>, vector<8x128xf32> -> vector<8x128xf32>
    %28 = vector.broadcast %14 : vector<1x128xf32> to vector<8x128xf32>
    %29 = arith.addf %27, %28 : vector<8x128xf32>
    %cst_25 = arith.constant dense<0xFF800000> : vector<8xf32>
    %30 = vector.multi_reduction <maximumf>, %29, %cst_25 [1] : vector<8x128xf32> to vector<8xf32>
    %31 = vector.shape_cast %30 : vector<8xf32> to vector<8x1xf32>
    %32 = vector.broadcast %31 : vector<8x1xf32> to vector<8x128xf32>
    %33 = arith.subf %29, %32 : vector<8x128xf32>
    %34 = math.exp %33 : vector<8x128xf32>
    %cst_26 = arith.constant dense<0.000000e+00> : vector<8xf32>
    %35 = vector.multi_reduction <add>, %34, %cst_26 [1] : vector<8x128xf32> to vector<8xf32>
    %36 = vector.shape_cast %35 : vector<8xf32> to vector<8x1xf32>
    %37 = vector.broadcast %36 : vector<8x1xf32> to vector<8x128xf32>
    %38 = arith.divf %34, %37 : vector<8x128xf32>
    %39 = vector.extract_strided_slice %38 {offsets = [0, 0], sizes = [8, 8], strides = [1, 1]} : vector<8x128xf32> to vector<8x8xf32>
    %c0_27 = arith.constant 0 : index
    %c0_28 = arith.constant 0 : index
    %40 = vector.load %arg4[%c0_27, %c0_28] : memref<8x8xf32, #tpu.memory_space<vmem>>, vector<8x8xf32>
    tpu.vector_store %arg4[%c0_27, %c0_28], %39 {strides = array<i32>} : memref<8x8xf32, #tpu.memory_space<vmem>>, vector<8x8xf32>,
    return
  }
  func.func @transform_0(%arg0: i32) -> (i32, i32) {
    %c0_i32 = arith.constant 0 : i32
    %c0_i32_0 = arith.constant 0 : i32
    return %arg0, %c0_i32 : i32, i32
  }
  func.func @transform_1(%arg0: i32) -> (i32, i32, i32) {
    %c0_i32 = arith.constant 0 : i32
    %c0_i32_0 = arith.constant 0 : i32
    %c0_i32_1 = arith.constant 0 : i32
    %c0_i32_2 = arith.constant 0 : i32
    return %c0_i32, %c0_i32_0, %c0_i32_1 : i32, i32, i32
  }
  func.func @transform_2(%arg0: i32) -> (i32, i32) {
    %c0_i32 = arith.constant 0 : i32
    %c0_i32_0 = arith.constant 0 : i32
    %c0_i32_1 = arith.constant 0 : i32
    return %c0_i32, %c0_i32_0 : i32, i32
  }
  func.func @transform_3(%arg0: i32) -> (i32, i32) {
    %c0_i32 = arith.constant 0 : i32
    %c0_i32_0 = arith.constant 0 : i32
    return %arg0, %c0_i32 : i32, i32
  }
}

</mosaic_0001>

<llo_original>
// kernel: actor_forward.1
$region0: #{actor_forward.1}
  #allocation0 [shape = 'u32[]', space=smem, size = 0x4, offset = 0x4, fixed_abs, tag = 'smem constant byte address 0x4 - core index']
  #allocation1 [shape = 'u32[72,128]{1,0:T(1,128)}', space=vmem, size = 0x9000, scoped, tag = 'internal scratch']
  #allocation2 [shape = 'f32[8,128]{1,0:T(8,128)}', space=vmem, size = 0x1000, scoped, tag = 'scratch operand']
  %s0 = inlined_call_operand.vmem [shape: f32[8,4], index: 0, kind: input, shape index: {}]
  %s1 = inlined_call_operand.hbm [shape: bf16[3,128,128], index: 1, kind: input, shape index: {}]
  %s2 = inlined_call_operand.vmem [shape: f32[3,128], index: 2, kind: input, shape index: {}]
  %s3 = inlined_call_operand.vmem [shape: f32[8,8], index: 3, kind: output, shape index: {}]
  %s4 = sld [smem:[#allocation0]]
  $region26: #{actor_forward.1} parent=0
    _
  %s6 = ssub.s32 1, %s4
  %s7 = scalar_select 0, %s6, %s4
  $region1: #{actor_forward.1} parent=0
    #allocation3 [shape = 'u8[98304]{0}', space=vmem, size = 0x18000, scoped, tag = 'input window, operand 1, single buffered']
    #allocation4 [shape = 's32[1]{0}', space=sflag, size = 0x4, scoped, tag = 'scoped memory for actor_forward.1']
    %8 = vsyncpa [#allocation4], 0
    // Predicated region
    $region2: #{actor_forward.1} parent=1 // pred_check
      _
    $region3: #{actor_forward.1} parent=1 // pred_check_branch
      %10 = sbr.rel (0) target = $region5
    $region4: #{actor_forward.1} parent=1 // pred_region
      _
    $region5: #{actor_forward.1} parent=1 // pred_fallthru
      _
    // Predicated region
    $region6: #{actor_forward.1} parent=1 // pred_check
      _
    $region7: #{actor_forward.1} parent=1 // pred_check_branch
      %12 = sbr.rel (0) target = $region9
    $region8: #{actor_forward.1} parent=1 // pred_region
      %14 = vsyncadd [#allocation4], 0
      %s15 = sshll.u32 %s1, 4
      %s16 = int_to_ptr.hbm [resolvable:$true] %s15
      %s17 = sshll.u32 [#allocation3], 4
      %s18 = int_to_ptr.vmem [resolvable:$true] %s17
      %23 = dma.hbm_to_vmem [thread:$0]  %s16, 3072, %s18, [#allocation4], 64, 64, 4
    $region9: #{actor_forward.1} parent=1 // pred_fallthru
      _
    // Predicated region
    $region10: #{actor_forward.1} parent=1 // pred_check
      _
    $region11: #{actor_forward.1} parent=1 // pred_check_branch
      %25 = sbr.rel (0) target = $region13
    $region12: #{actor_forward.1} parent=1 // pred_region
      _
    $region13: #{actor_forward.1} parent=1 // pred_fallthru
      _
    // Predicated region
    $region14: #{actor_forward.1} parent=1 // pred_check
      _
    $region15: #{actor_forward.1} parent=1 // pred_check_branch
      %27 = sbr.rel (0) target = $region17
    $region16: #{actor_forward.1} parent=1 // pred_region
      %29 = dma.done [#allocation4], 3072
    $region17: #{actor_forward.1} parent=1 // pred_fallthru
      _
    %30 = vst [vmem:[#allocation2] sm:$0xff] 0.0
    %v31 = vld [vmem:[%s0] sm:$0xff]
    %vm32 = vcmask 31744
    %33 = vst.msk [vmem:[#allocation2] sm:$0xff] %vm32, %v31
    %v34 = vld [vmem:[#allocation2] sm:$0xff]
    %v35 = vpack.c.bf16 %v34, %v34
    %v36 = vld [vmem:[#allocation3] sm:$0xf]
    %v37 = vld [vmem:[#allocation3 + $0x4] sm:$0xf]
    %v38 = vld [vmem:[#allocation3 + $0x8] sm:$0xf]
    %v39 = vld [vmem:[#allocation3 + $0xc] sm:$0xf]
    %v40 = vld [vmem:[#allocation3 + $0x10] sm:$0xf]
    %v41 = vld [vmem:[#allocation3 + $0x14] sm:$0xf]
    %v42 = vld [vmem:[#allocation3 + $0x18] sm:$0xf]
    %v43 = vld [vmem:[#allocation3 + $0x1c] sm:$0xf]
    %v44 = vld [vmem:[#allocation3 + $0x20] sm:$0xf]
    %v45 = vld [vmem:[#allocation3 + $0x24] sm:$0xf]
    %v46 = vld [vmem:[#allocation3 + $0x28] sm:$0xf]
    %v47 = vld [vmem:[#allocation3 + $0x2c] sm:$0xf]
    %v48 = vld [vmem:[#allocation3 + $0x30] sm:$0xf]
    %v49 = vld [vmem:[#allocation3 + $0x34] sm:$0xf]
    %v50 = vld [vmem:[#allocation3 + $0x38] sm:$0xf]
    %v51 = vld [vmem:[#allocation3 + $0x3c] sm:$0xf]
    %s52 = scalar_lea.vmem [#allocation3], 64
    %v53 = vld [vmem:[%s52] sm:$0xf]
    %v54 = vld [vmem:[%s52 + $0x4] sm:$0xf]
    %v55 = vld [vmem:[%s52 + $0x8] sm:$0xf]
    %v56 = vld [vmem:[%s52 + $0xc] sm:$0xf]
    %v57 = vld [vmem:[%s52 + $0x10] sm:$0xf]
    %v58 = vld [vmem:[%s52 + $0x14] sm:$0xf]
    %v59 = vld [vmem:[%s52 + $0x18] sm:$0xf]
    %v60 = vld [vmem:[%s52 + $0x1c] sm:$0xf]
    %v61 = vld [vmem:[%s52 + $0x20] sm:$0xf]
    %v62 = vld [vmem:[%s52 + $0x24] sm:$0xf]
    %v63 = vld [vmem:[%s52 + $0x28] sm:$0xf]
    %v64 = vld [vmem:[%s52 + $0x2c] sm:$0xf]
    %v65 = vld [vmem:[%s52 + $0x30] sm:$0xf]
    %v66 = vld [vmem:[%s52 + $0x34] sm:$0xf]
    %v67 = vld [vmem:[%s52 + $0x38] sm:$0xf]
    %v68 = vld [vmem:[%s52 + $0x3c] sm:$0xf]
    %s69 = scalar_lea.vmem [#allocation3], 128
    %v70 = vld [vmem:[%s69] sm:$0xf]
    %v71 = vld [vmem:[%s69 + $0x4] sm:$0xf]
    %v72 = vld [vmem:[%s69 + $0x8] sm:$0xf]
    %v73 = vld [vmem:[%s69 + $0xc] sm:$0xf]
    %v74 = vld [vmem:[%s69 + $0x10] sm:$0xf]
    %v75 = vld [vmem:[%s69 + $0x14] sm:$0xf]
    %v76 = vld [vmem:[%s69 + $0x18] sm:$0xf]
    %v77 = vld [vmem:[%s69 + $0x1c] sm:$0xf]
    %v78 = vld [vmem:[%s69 + $0x20] sm:$0xf]
    %v79 = vld [vmem:[%s69 + $0x24] sm:$0xf]
    %v80 = vld [vmem:[%s69 + $0x28] sm:$0xf]
    %v81 = vld [vmem:[%s69 + $0x2c] sm:$0xf]
    %v82 = vld [vmem:[%s69 + $0x30] sm:$0xf]
    %v83 = vld [vmem:[%s69 + $0x34] sm:$0xf]
    %v84 = vld [vmem:[%s69 + $0x38] sm:$0xf]
    %v85 = vld [vmem:[%s69 + $0x3c] sm:$0xf]
    %v86 = vld [vmem:[%s2] sm:$0x1]
    %v87 = vld [vmem:[%s2 + $0x1] sm:$0x1]
    %v88 = vld [vmem:[%s2 + $0x2] sm:$0x1]
    %v89 = vperm.slane %v86, 0
    %v106 = vunpack.c.l.b16 %v36
    %v107 = vunpack.c.l.b16 %v37
    %v108 = vunpack.c.l.b16 %v38
    %v109 = vunpack.c.l.b16 %v39
    %v110 = vunpack.c.l.b16 %v40
    %v111 = vunpack.c.l.b16 %v41
    %v112 = vunpack.c.l.b16 %v42
    %v113 = vunpack.c.l.b16 %v43
    %v114 = vunpack.c.l.b16 %v44
    %v115 = vunpack.c.l.b16 %v45
    %v116 = vunpack.c.l.b16 %v46
    %v117 = vunpack.c.l.b16 %v47
    %v118 = vunpack.c.l.b16 %v48
    %v119 = vunpack.c.l.b16 %v49
    %v120 = vunpack.c.l.b16 %v50
    %v121 = vunpack.c.l.b16 %v51
    %v122 = vpack.c.b16 %v107, %v106
    %v123 = vpack.c.b16 %v109, %v108
    %v124 = vpack.c.b16 %v111, %v110
    %v125 = vpack.c.b16 %v113, %v112
    %v126 = vpack.c.b16 %v115, %v114
    %v127 = vpack.c.b16 %v117, %v116
    %v128 = vpack.c.b16 %v119, %v118
    %v129 = vpack.c.b16 %v121, %v120
    %138 = vmatpush.bf16.msra.mxu0 %v129
    %139 = vmatpush.bf16.msra.mxu0 %v128
    %140 = vmatpush.bf16.msra.mxu0 %v127
    %141 = vmatpush.bf16.msra.mxu0 %v126
    %142 = vmatpush.bf16.msra.mxu0 %v125
    %143 = vmatpush.bf16.msra.mxu0 %v124
    %144 = vmatpush.bf16.msra.mxu0 %v123
    %145 = vmatpush.bf16.msra.mxu0 %v122
    %146 = vmatmul.bf16.gmra.mxu0 %v35
    %v147 = vpop.f32.mrf.mxu0
    %v148 = vadd.f32 %v89, %v147
    %v149 = vpop.f32.mrf.mxu0
    %150 = vdwg.mxu0
    %v151 = vmax.f32 %v148, 0.0
    %v152 = vpack.c.bf16 %v151, %v151
    %v153 = vperm.slane %v87, 0
    %v170 = vunpack.c.l.b16 %v53
    %v171 = vunpack.c.l.b16 %v54
    %v172 = vunpack.c.l.b16 %v55
    %v173 = vunpack.c.l.b16 %v56
    %v174 = vunpack.c.l.b16 %v57
    %v175 = vunpack.c.l.b16 %v58
    %v176 = vunpack.c.l.b16 %v59
    %v177 = vunpack.c.l.b16 %v60
    %v178 = vunpack.c.l.b16 %v61
    %v179 = vunpack.c.l.b16 %v62
    %v180 = vunpack.c.l.b16 %v63
    %v181 = vunpack.c.l.b16 %v64
    %v182 = vunpack.c.l.b16 %v65
    %v183 = vunpack.c.l.b16 %v66
    %v184 = vunpack.c.l.b16 %v67
    %v185 = vunpack.c.l.b16 %v68
    %v186 = vpack.c.b16 %v171, %v170
    %v187 = vpack.c.b16 %v173, %v172
    %v188 = vpack.c.b16 %v175, %v174
    %v189 = vpack.c.b16 %v177, %v176
    %v190 = vpack.c.b16 %v179, %v178
    %v191 = vpack.c.b16 %v181, %v180
    %v192 = vpack.c.b16 %v183, %v182
    %v193 = vpack.c.b16 %v185, %v184
    %202 = vmatpush.bf16.msra.mxu0 %v193
    %203 = vmatpush.bf16.msra.mxu0 %v192
    %204 = vmatpush.bf16.msra.mxu0 %v191
    %205 = vmatpush.bf16.msra.mxu0 %v190
    %206 = vmatpush.bf16.msra.mxu0 %v189
    %207 = vmatpush.bf16.msra.mxu0 %v188
    %208 = vmatpush.bf16.msra.mxu0 %v187
    %209 = vmatpush.bf16.msra.mxu0 %v186
    %210 = vmatmul.bf16.gmra.mxu0 %v152
    %v211 = vpop.f32.mrf.mxu0
    %v212 = vadd.f32 %v153, %v211
    %v213 = vpop.f32.mrf.mxu0
    %214 = vdwg.mxu0
    %v215 = vmax.f32 %v212, 0.0
    %v216 = vpack.c.bf16 %v215, %v215
    %v217 = vperm.slane %v88, 0
    %v234 = vunpack.c.l.b16 %v70
    %v235 = vunpack.c.l.b16 %v71
    %v236 = vunpack.c.l.b16 %v72
    %v237 = vunpack.c.l.b16 %v73
    %v238 = vunpack.c.l.b16 %v74
    %v239 = vunpack.c.l.b16 %v75
    %v240 = vunpack.c.l.b16 %v76
    %v241 = vunpack.c.l.b16 %v77
    %v242 = vunpack.c.l.b16 %v78
    %v243 = vunpack.c.l.b16 %v79
    %v244 = vunpack.c.l.b16 %v80
    %v245 = vunpack.c.l.b16 %v81
    %v246 = vunpack.c.l.b16 %v82
    %v247 = vunpack.c.l.b16 %v83
    %v248 = vunpack.c.l.b16 %v84
    %v249 = vunpack.c.l.b16 %v85
    %v250 = vpack.c.b16 %v235, %v234
    %v251 = vpack.c.b16 %v237, %v236
    %v252 = vpack.c.b16 %v239, %v238
    %v253 = vpack.c.b16 %v241, %v240
    %v254 = vpack.c.b16 %v243, %v242
    %v255 = vpack.c.b16 %v245, %v244
    %v256 = vpack.c.b16 %v247, %v246
    %v257 = vpack.c.b16 %v249, %v248
    %266 = vmatpush.bf16.msra.mxu0 %v257
    %267 = vmatpush.bf16.msra.mxu0 %v256
    %268 = vmatpush.bf16.msra.mxu0 %v255
    %269 = vmatpush.bf16.msra.mxu0 %v254
    %270 = vmatpush.bf16.msra.mxu0 %v253
    %271 = vmatpush.bf16.msra.mxu0 %v252
    %272 = vmatpush.bf16.msra.mxu0 %v251
    %273 = vmatpush.bf16.msra.mxu0 %v250
    %274 = vmatmul.bf16.gmra.mxu0 %v216
    %v275 = vpop.f32.mrf.mxu0
    %v276 = vadd.f32 %v217, %v275
    %v277 = vpop.f32.mrf.mxu0
    %278 = vdwg.mxu0
    %279 = vmax.xlane.f32.xlu0 %v276
    %v280 = vpop.xlane.xlu0 %279
    %v281 = vsub.f32 %v276, %v280
    %v282 = vmul.f32 %v281, 1.442695
    %v283 = vpow.pop %v282
    %284 = vadd.xlane.f32.xlu0 %v283
    %v285 = vpop.xlane.xlu0 %284
    %v286 = vrcp.pop %v285
    %v287 = vmul.f32 %v285, %v286
    %v288 = vsub.f32 1.0, %v287
    %v289 = vmul.f32 %v286, %v288
    %v290 = vadd.f32 %v286, %v289
    %vm291 = vweird.f32 %v285
    %vm292 = vweird.f32 %v286
    %vm293 = vmor %vm291, %vm292
    %v294 = vsel %vm293, %v286, %v290
    %v295 = vand.u32 2147483647, %v285
    %vm296 = vcmp.eq.f32.partialorder %v295, 8.507059e+37
    %v297 = vand.u32 %v285, 2147483648
    %v298 = vor.u32 1.1754944e-38, %v297
    %v299 = vsel %vm296, %v298, %v294
    %v300 = vmul.f32 %v283, %v299
    %vm301 = vcmask 64512
    %302 = vst.msk [vmem:[%s3] sm:$0xff] %vm301, %v300
    // Predicated region
    $region18: #{actor_forward.1} parent=1 // pred_check
      _
    $region19: #{actor_forward.1} parent=1 // pred_check_branch
      %304 = sbr.rel (0) target = $region21
    $region20: #{actor_forward.1} parent=1 // pred_region
      _
    $region21: #{actor_forward.1} parent=1 // pred_fallthru
      _
    // Predicated region
    $region22: #{actor_forward.1} parent=1 // pred_check
      _
    $region23: #{actor_forward.1} parent=1 // pred_check_branch
      %306 = sbr.rel (0) target = $region25
    $region24: #{actor_forward.1} parent=1 // pred_region
      _
    $region25: #{actor_forward.1} parent=1 // pred_fallthru
      _
    %307 = vsyncpa [#allocation4], 1

</llo_original>
